<compile_context>
chip_gen: v7x
topology: tpu7x:2x2x1
jax: 0.10.0
libtpu: 0.0.40
codegen_flags: <defaults>
</compile_context>

<pallas_src>
import jax
import jax.numpy as jnp
from jax.experimental import pallas as pl
from jax.experimental.pallas import tpu as pltpu

LEAKY_SLOPE = 0.01  # PyTorch nn.LeakyReLU default negative_slope


# ----------------------------- fused Pallas kernel -------------------------- #

def _make_fused_kernel(n_blocks, has_scale_flags):
    """Build a kernel for n_blocks [Linear+LeakyReLU+BN] blocks + final Linear.

    Ref order: (x, then per block: w, b[, scale], shift, then final w, b, out).
    `has_scale_flags[i]` is True only if the BN scale of block i could not be
    folded into the weights (never the case for default-initialized BN).
    """

    def kernel(*refs):
        x_ref = refs[0]
        out_ref = refs[-1]
        params = refs[1:-1]

        h = x_ref[...]                                   # (TM, Din) activation stays in VMEM/vregs
        i = 0
        for blk in range(n_blocks):
            w = params[i][...]
            b = params[i + 1][...]
            i += 2
            # Linear (BN scale pre-folded into w, b) + bias
            y = jnp.dot(h, w, preferred_element_type=jnp.float32) + b
            # Dropout = identity in eval mode; LeakyReLU
            y = jnp.where(y >= 0.0, y, LEAKY_SLOPE * y)
            if has_scale_flags[blk]:                     # fallback path (scale not foldable)
                y = y * params[i][...]
                i += 1
            # BatchNorm1d (eval) residual shift
            h = y + params[i][...]
            i += 1

        # Final Linear (output dim zero-padded to a lane-dense 128 multiple)
        w = params[i][...]
        b = params[i + 1][...]
        out_ref[...] = jnp.dot(h, w, preferred_element_type=jnp.float32) + b

    return kernel


def _pick_batch_tile(batch):
    # Prefer large, MXU/megacore-friendly batch tiles; fall back to the full
    # batch (block == full array dim) for small/odd batches.
    for tm in (256, 128):
        if batch % tm == 0:
            return tm
    return batch


def _full_spec(arr):
    r, c = arr.shape
    return pl.BlockSpec((r, c), lambda i: (0, 0))   # grid-invariant: stays VMEM-resident


def fc_forward(layers, h):
    """Fused forward pass of the whole FC stack in one pallas_call."""
    batch, d_in = h.shape
    blocks = [l for l in layers if l["kind"] == "block"]
    final = layers[-1]
    assert final["kind"] == "linear"

    has_scale = tuple(bool(b["has_scale"]) for b in blocks)

    # Flatten parameters in kernel order.
    params = []
    for blk in blocks:
        params.append(blk["w"])
        params.append(blk["b"])
        if blk["has_scale"]:
            params.append(blk["scale"])
        params.append(blk["shift"])
    params.append(final["w"])
    params.append(final["b"])

    out_pad = final["out_pad"]
    n_tasks = final["n_tasks"]

    tm = _pick_batch_tile(batch)
    grid = (batch // tm,)

    kernel = _make_fused_kernel(len(blocks), has_scale)

    out = pl.pallas_call(
        kernel,
        out_shape=jax.ShapeDtypeStruct((batch, out_pad), jnp.float32),
        grid=grid,
        in_specs=[pl.BlockSpec((tm, d_in), lambda i: (i, 0))]
                 + [_full_spec(p) for p in params],
        out_specs=pl.BlockSpec((tm, out_pad), lambda i: (i, 0)),
        compiler_params=pltpu.CompilerParams(
            dimension_semantics=("parallel",)),   # batch tiles split across TCs (v7x)
    )(h, *params)

    return out[:, :n_tasks]


# --------------------------- parameter construction ------------------------- #

def init_fc_params(key, d_graph_layer, d_FC_layer, n_FC_layer, n_tasks, bn_eps=1e-5):
    """Mirror FC.__init__'s ModuleList structure deterministically.

    BN scale is folded into the Linear weight/bias when it is non-negative
    (LeakyReLU is positively homogeneous), and biases/shifts are pre-reshaped
    to (1, Dout) so the forward path does no per-call reshapes.
    """

    def linear_params(k, din, dout):
        kw, kb = jax.random.split(k)
        bound = 1.0 / float(din) ** 0.5
        w = jax.random.uniform(kw, (din, dout), jnp.float32, -bound, bound)
        b = jax.random.uniform(kb, (dout,), jnp.float32, -bound, bound)
        return w, b

    def block_params(k, din, dout):
        w, b = linear_params(k, din, dout)
        # BatchNorm1d default init: gamma=1, beta=0, running_mean=0, running_var=1
        gamma = jnp.ones((dout,), jnp.float32)
        beta = jnp.zeros((dout,), jnp.float32)
        running_mean = jnp.zeros((dout,), jnp.float32)
        running_var = jnp.ones((dout,), jnp.float32)
        scale = gamma * jax.lax.rsqrt(running_var + bn_eps)
        shift = beta - running_mean * scale
        if bool(jnp.all(scale >= 0.0)):
            # Fold: LeakyReLU(s*y) == s*LeakyReLU(y) for s >= 0.
            w = w * scale[None, :]
            b = b * scale
            return {"kind": "block", "w": w, "b": b.reshape(1, -1),
                    "shift": shift.reshape(1, -1), "has_scale": False}
        return {"kind": "block", "w": w, "b": b.reshape(1, -1),
                "scale": scale.reshape(1, -1), "shift": shift.reshape(1, -1),
                "has_scale": True}

    layers = []
    keys = jax.random.split(key, 2 * n_FC_layer + 2)
    ki = 0
    for j in range(n_FC_layer):
        if j == 0:
            layers.append(block_params(keys[ki], d_graph_layer, d_FC_layer))
            ki += 1
        if j == n_FC_layer - 1:
            w, b = linear_params(keys[ki], d_FC_layer, n_tasks)
            ki += 1
            # Zero-pad the output features to a lane-dense multiple of 128 so
            # the kernel's single HBM store is unmasked; wrapper slices back.
            out_pad = 128 * pl.cdiv(n_tasks, 128)
            w_pad = jnp.zeros((d_FC_layer, out_pad), jnp.float32).at[:, :n_tasks].set(w)
            b_pad = jnp.zeros((1, out_pad), jnp.float32).at[0, :n_tasks].set(b)
            layers.append({"kind": "linear", "w": w_pad, "b": b_pad,
                           "n_tasks": n_tasks, "out_pad": out_pad})
        else:
            layers.append(block_params(keys[ki], d_FC_layer, d_FC_layer))
            ki += 1
    return layers


# ------------------------------ pure-JAX reference --------------------------- #

def fc_reference(layers, h):
    for layer in layers:
        if layer["kind"] == "block":
            y = h @ layer["w"] + layer["b"]
            y = jnp.where(y >= 0.0, y, LEAKY_SLOPE * y)
            if layer["has_scale"]:
                y = y * layer["scale"]
            h = y + layer["shift"]
        else:
            h = (h @ layer["w"] + layer["b"])[:, :layer["n_tasks"]]
    return h


# ----------------------------------- main ------------------------------------ #

if __name__ == "__main__":
    d_graph_layer = 32
    d_FC_layer = 32
    n_FC_layer = 3
    dropout = 0.2          # identity in eval mode
    n_tasks = 2
    batch = 8

    key = jax.random.PRNGKey(0)
    k_params, k_x = jax.random.split(key)

    layers = init_fc_params(k_params, d_graph_layer, d_FC_layer, n_FC_layer, n_tasks)
    h = jax.random.normal(k_x, (batch, d_graph_layer), jnp.float32)

    out = fc_forward(layers, h)
    out = jax.block_until_ready(out)

    assert out.shape == (batch, n_tasks), out.shape
    assert bool(jnp.all(jnp.isfinite(out)))

    ref = fc_reference(layers, h)
    # Loose tolerance: MXU default-precision f32 matmuls vs XLA reference.
    assert bool(jnp.allclose(out, ref, atol=5e-2, rtol=5e-2)), (out, ref)

    print("KERNEL_OK")
</pallas_src>

<mosaic_0001>
module attributes {stable_mosaic.version = 11 : i64} {
  func.func @kernel(%arg0: i32, %arg1: memref<8x32xf32, #tpu.memory_space<vmem>>, %arg2: memref<32x32xf32, #tpu.memory_space<vmem>>, %arg3: memref<1x32xf32, #tpu.memory_space<vmem>>, %arg4: memref<1x32xf32, #tpu.memory_space<vmem>>, %arg5: memref<32x32xf32, #tpu.memory_space<vmem>>, %arg6: memref<1x32xf32, #tpu.memory_space<vmem>>, %arg7: memref<1x32xf32, #tpu.memory_space<vmem>>, %arg8: memref<32x32xf32, #tpu.memory_space<vmem>>, %arg9: memref<1x32xf32, #tpu.memory_space<vmem>>, %arg10: memref<1x32xf32, #tpu.memory_space<vmem>>, %arg11: memref<32x128xf32, #tpu.memory_space<vmem>>, %arg12: memref<1x128xf32, #tpu.memory_space<vmem>>, %arg13: memref<8x128xf32, #tpu.memory_space<vmem>>) attributes {dimension_semantics = [#tpu.dimension_semantics<parallel>], iteration_bounds = array<i64: 1>, scalar_prefetch = 0 : i64, scratch_operands = 0 : i64, tpu.core_type = #tpu.core_type<tc>, window_params = [{transform_indices = @transform_0, window_bounds = array<i64: 8, 32>}, {pipeline_mode = #tpu.pipeline_mode<synchronous>, transform_indices = @transform_1, window_bounds = array<i64: 32, 32>}, {pipeline_mode = #tpu.pipeline_mode<synchronous>, transform_indices = @transform_2, window_bounds = array<i64: 1, 32>}, {pipeline_mode = #tpu.pipeline_mode<synchronous>, transform_indices = @transform_3, window_bounds = array<i64: 1, 32>}, {pipeline_mode = #tpu.pipeline_mode<synchronous>, transform_indices = @transform_4, window_bounds = array<i64: 32, 32>}, {pipeline_mode = #tpu.pipeline_mode<synchronous>, transform_indices = @transform_5, window_bounds = array<i64: 1, 32>}, {pipeline_mode = #tpu.pipeline_mode<synchronous>, transform_indices = @transform_6, window_bounds = array<i64: 1, 32>}, {pipeline_mode = #tpu.pipeline_mode<synchronous>, transform_indices = @transform_7, window_bounds = array<i64: 32, 32>}, {pipeline_mode = #tpu.pipeline_mode<synchronous>, transform_indices = @transform_8, window_bounds = array<i64: 1, 32>}, {pipeline_mode = #tpu.pipeline_mode<synchronous>, transform_indices = @transform_9, window_bounds = array<i64: 1, 32>}, {pipeline_mode = #tpu.pipeline_mode<synchronous>, transform_indices = @transform_10, window_bounds = array<i64: 32, 128>}, {pipeline_mode = #tpu.pipeline_mode<synchronous>, transform_indices = @transform_11, window_bounds = array<i64: 1, 128>}, {transform_indices = @transform_12, window_bounds = array<i64: 8, 128>}]} {
    %c0 = arith.constant 0 : index
    %c0_0 = arith.constant 0 : index
    %0 = vector.load %arg1[%c0, %c0_0] : memref<8x32xf32, #tpu.memory_space<vmem>>, vector<8x32xf32>
    %c0_1 = arith.constant 0 : index
    %c0_2 = arith.constant 0 : index
    %1 = vector.load %arg2[%c0_1, %c0_2] : memref<32x32xf32, #tpu.memory_space<vmem>>, vector<32x32xf32>
    %c0_3 = arith.constant 0 : index
    %c0_4 = arith.constant 0 : index
    %2 = vector.load %arg3[%c0_3, %c0_4] : memref<1x32xf32, #tpu.memory_space<vmem>>, vector<1x32xf32>
    %cst = arith.constant dense<0.000000e+00> : vector<8x32xf32>
    %3 = tpu.matmul %0, %1, %cst {dimension_numbers = #tpu.dot_dimension_numbers<[1], [0], [0], [1], [0, 0, 1, 1], [], []>} : vector<8x32xf32>, vector<32x32xf32>, vector<8x32xf32> -> vector<8x32xf32>
    %4 = vector.broadcast %2 : vector<1x32xf32> to vector<8x32xf32>
    %5 = arith.addf %3, %4 : vector<8x32xf32>
    %cst_5 = arith.constant 0.000000e+00 : f32
    %6 = vector.broadcast %cst_5 : f32 to vector<8x32xf32>
    %7 = arith.cmpf oge, %5, %6 : vector<8x32xf32>
    %cst_6 = arith.constant 0.00999999977 : f32
    %8 = vector.broadcast %cst_6 : f32 to vector<8x32xf32>
    %9 = arith.mulf %8, %5 : vector<8x32xf32>
    %10 = arith.select %7, %5, %9 : vector<8x32xi1>, vector<8x32xf32>
    %c0_7 = arith.constant 0 : index
    %c0_8 = arith.constant 0 : index
    %11 = vector.load %arg4[%c0_7, %c0_8] : memref<1x32xf32, #tpu.memory_space<vmem>>, vector<1x32xf32>
    %12 = vector.broadcast %11 : vector<1x32xf32> to vector<8x32xf32>
    %13 = arith.addf %10, %12 : vector<8x32xf32>
    %c0_9 = arith.constant 0 : index
    %c0_10 = arith.constant 0 : index
    %14 = vector.load %arg5[%c0_9, %c0_10] : memref<32x32xf32, #tpu.memory_space<vmem>>, vector<32x32xf32>
    %c0_11 = arith.constant 0 : index
    %c0_12 = arith.constant 0 : index
    %15 = vector.load %arg6[%c0_11, %c0_12] : memref<1x32xf32, #tpu.memory_space<vmem>>, vector<1x32xf32>
    %cst_13 = arith.constant dense<0.000000e+00> : vector<8x32xf32>
    %16 = tpu.matmul %13, %14, %cst_13 {dimension_numbers = #tpu.dot_dimension_numbers<[1], [0], [0], [1], [0, 0, 1, 1], [], []>} : vector<8x32xf32>, vector<32x32xf32>, vector<8x32xf32> -> vector<8x32xf32>
    %17 = vector.broadcast %15 : vector<1x32xf32> to vector<8x32xf32>
    %18 = arith.addf %16, %17 : vector<8x32xf32>
    %cst_14 = arith.constant 0.000000e+00 : f32
    %19 = vector.broadcast %cst_14 : f32 to vector<8x32xf32>
    %20 = arith.cmpf oge, %18, %19 : vector<8x32xf32>
    %cst_15 = arith.constant 0.00999999977 : f32
    %21 = vector.broadcast %cst_15 : f32 to vector<8x32xf32>
    %22 = arith.mulf %21, %18 : vector<8x32xf32>
    %23 = arith.select %20, %18, %22 : vector<8x32xi1>, vector<8x32xf32>
    %c0_16 = arith.constant 0 : index
    %c0_17 = arith.constant 0 : index
    %24 = vector.load %arg7[%c0_16, %c0_17] : memref<1x32xf32, #tpu.memory_space<vmem>>, vector<1x32xf32>
    %25 = vector.broadcast %24 : vector<1x32xf32> to vector<8x32xf32>
    %26 = arith.addf %23, %25 : vector<8x32xf32>
    %c0_18 = arith.constant 0 : index
    %c0_19 = arith.constant 0 : index
    %27 = vector.load %arg8[%c0_18, %c0_19] : memref<32x32xf32, #tpu.memory_space<vmem>>, vector<32x32xf32>
    %c0_20 = arith.constant 0 : index
    %c0_21 = arith.constant 0 : index
    %28 = vector.load %arg9[%c0_20, %c0_21] : memref<1x32xf32, #tpu.memory_space<vmem>>, vector<1x32xf32>
    %cst_22 = arith.constant dense<0.000000e+00> : vector<8x32xf32>
    %29 = tpu.matmul %26, %27, %cst_22 {dimension_numbers = #tpu.dot_dimension_numbers<[1], [0], [0], [1], [0, 0, 1, 1], [], []>} : vector<8x32xf32>, vector<32x32xf32>, vector<8x32xf32> -> vector<8x32xf32>
    %30 = vector.broadcast %28 : vector<1x32xf32> to vector<8x32xf32>
    %31 = arith.addf %29, %30 : vector<8x32xf32>
    %cst_23 = arith.constant 0.000000e+00 : f32
    %32 = vector.broadcast %cst_23 : f32 to vector<8x32xf32>
    %33 = arith.cmpf oge, %31, %32 : vector<8x32xf32>
    %cst_24 = arith.constant 0.00999999977 : f32
    %34 = vector.broadcast %cst_24 : f32 to vector<8x32xf32>
    %35 = arith.mulf %34, %31 : vector<8x32xf32>
    %36 = arith.select %33, %31, %35 : vector<8x32xi1>, vector<8x32xf32>
    %c0_25 = arith.constant 0 : index
    %c0_26 = arith.constant 0 : index
    %37 = vector.load %arg10[%c0_25, %c0_26] : memref<1x32xf32, #tpu.memory_space<vmem>>, vector<1x32xf32>
    %38 = vector.broadcast %37 : vector<1x32xf32> to vector<8x32xf32>
    %39 = arith.addf %36, %38 : vector<8x32xf32>
    %c0_27 = arith.constant 0 : index
    %c0_28 = arith.constant 0 : index
    %40 = vector.load %arg11[%c0_27, %c0_28] : memref<32x128xf32, #tpu.memory_space<vmem>>, vector<32x128xf32>
    %c0_29 = arith.constant 0 : index
    %c0_30 = arith.constant 0 : index
    %41 = vector.load %arg12[%c0_29, %c0_30] : memref<1x128xf32, #tpu.memory_space<vmem>>, vector<1x128xf32>
    %cst_31 = arith.constant dense<0.000000e+00> : vector<8x128xf32>
    %42 = tpu.matmul %39, %40, %cst_31 {dimension_numbers = #tpu.dot_dimension_numbers<[1], [0], [0], [1], [0, 0, 1, 1], [], []>} : vector<8x32xf32>, vector<32x128xf32>, vector<8x128xf32> -> vector<8x128xf32>
    %43 = vector.broadcast %41 : vector<1x128xf32> to vector<8x128xf32>
    %44 = arith.addf %42, %43 : vector<8x128xf32>
    %c0_32 = arith.constant 0 : index
    %c0_33 = arith.constant 0 : index
    %45 = vector.load %arg13[%c0_32, %c0_33] : memref<8x128xf32, #tpu.memory_space<vmem>>, vector<8x128xf32>
    tpu.vector_store %arg13[%c0_32, %c0_33], %44 {strides = array<i32>} : memref<8x128xf32, #tpu.memory_space<vmem>>, vector<8x128xf32>,
    return
  }
  func.func @transform_0(%arg0: i32) -> (i32, i32) {
    %c0_i32 = arith.constant 0 : i32
    %c0_i32_0 = arith.constant 0 : i32
    return %arg0, %c0_i32 : i32, i32
  }
  func.func @transform_1(%arg0: i32) -> (i32, i32) {
    %c0_i32 = arith.constant 0 : i32
    %c0_i32_0 = arith.constant 0 : i32
    %c0_i32_1 = arith.constant 0 : i32
    return %c0_i32, %c0_i32_0 : i32, i32
  }
  func.func @transform_2(%arg0: i32) -> (i32, i32) {
    %c0_i32 = arith.constant 0 : i32
    %c0_i32_0 = arith.constant 0 : i32
    %c0_i32_1 = arith.constant 0 : i32
    return %c0_i32, %c0_i32_0 : i32, i32
  }
  func.func @transform_3(%arg0: i32) -> (i32, i32) {
    %c0_i32 = arith.constant 0 : i32
    %c0_i32_0 = arith.constant 0 : i32
    %c0_i32_1 = arith.constant 0 : i32
    return %c0_i32, %c0_i32_0 : i32, i32
  }
  func.func @transform_4(%arg0: i32) -> (i32, i32) {
    %c0_i32 = arith.constant 0 : i32
    %c0_i32_0 = arith.constant 0 : i32
    %c0_i32_1 = arith.constant 0 : i32
    return %c0_i32, %c0_i32_0 : i32, i32
  }
  func.func @transform_5(%arg0: i32) -> (i32, i32) {
    %c0_i32 = arith.constant 0 : i32
    %c0_i32_0 = arith.constant 0 : i32
    %c0_i32_1 = arith.constant 0 : i32
    return %c0_i32, %c0_i32_0 : i32, i32
  }
  func.func @transform_6(%arg0: i32) -> (i32, i32) {
    %c0_i32 = arith.constant 0 : i32
    %c0_i32_0 = arith.constant 0 : i32
    %c0_i32_1 = arith.constant 0 : i32
    return %c0_i32, %c0_i32_0 : i32, i32
  }
  func.func @transform_7(%arg0: i32) -> (i32, i32) {
    %c0_i32 = arith.constant 0 : i32
    %c0_i32_0 = arith.constant 0 : i32
    %c0_i32_1 = arith.constant 0 : i32
    return %c0_i32, %c0_i32_0 : i32, i32
  }
  func.func @transform_8(%arg0: i32) -> (i32, i32) {
    %c0_i32 = arith.constant 0 : i32
    %c0_i32_0 = arith.constant 0 : i32
    %c0_i32_1 = arith.constant 0 : i32
    return %c0_i32, %c0_i32_0 : i32, i32
  }
  func.func @transform_9(%arg0: i32) -> (i32, i32) {
    %c0_i32 = arith.constant 0 : i32
    %c0_i32_0 = arith.constant 0 : i32
    %c0_i32_1 = arith.constant 0 : i32
    return %c0_i32, %c0_i32_0 : i32, i32
  }
  func.func @transform_10(%arg0: i32) -> (i32, i32) {
    %c0_i32 = arith.constant 0 : i32
    %c0_i32_0 = arith.constant 0 : i32
    %c0_i32_1 = arith.constant 0 : i32
    return %c0_i32, %c0_i32_0 : i32, i32
  }
  func.func @transform_11(%arg0: i32) -> (i32, i32) {
    %c0_i32 = arith.constant 0 : i32
    %c0_i32_0 = arith.constant 0 : i32
    %c0_i32_1 = arith.constant 0 : i32
    return %c0_i32, %c0_i32_0 : i32, i32
  }
  func.func @transform_12(%arg0: i32) -> (i32, i32) {
    %c0_i32 = arith.constant 0 : i32
    %c0_i32_0 = arith.constant 0 : i32
    return %arg0, %c0_i32 : i32, i32
  }
}

</mosaic_0001>

<llo_original>
// kernel: tpu_custom_call.1
$region0: #{tpu_custom_call.1}
  #allocation0 [shape = 'u32[]', space=smem, size = 0x4, offset = 0x4, fixed_abs, tag = 'smem constant byte address 0x4 - core index']
  #allocation1 [shape = 'u32[144,128]{1,0:T(1,128)}', space=vmem, size = 0x12000, scoped, tag = 'internal scratch']
  %s0 = inlined_call_operand.hbm [shape: f32[8,32], index: 0, kind: input, shape index: {}]
  %s1 = inlined_call_operand.hbm [shape: f32[32,32], index: 1, kind: input, shape index: {}]
  %s2 = inlined_call_operand.vmem [shape: f32[1,32], index: 2, kind: input, shape index: {}]
  %s3 = inlined_call_operand.vmem [shape: f32[1,32], index: 3, kind: input, shape index: {}]
  %s4 = inlined_call_operand.hbm [shape: f32[32,32], index: 4, kind: input, shape index: {}]
  %s5 = inlined_call_operand.vmem [shape: f32[1,32], index: 5, kind: input, shape index: {}]
  %s6 = inlined_call_operand.vmem [shape: f32[1,32], index: 6, kind: input, shape index: {}]
  %s7 = inlined_call_operand.hbm [shape: f32[32,32], index: 7, kind: input, shape index: {}]
  %s8 = inlined_call_operand.vmem [shape: f32[1,32], index: 8, kind: input, shape index: {}]
  %s9 = inlined_call_operand.hbm [shape: f32[1,32], index: 9, kind: input, shape index: {}]
  %s10 = inlined_call_operand.vmem [shape: f32[32,128], index: 10, kind: input, shape index: {}]
  %s11 = inlined_call_operand.vmem [shape: f32[1,128], index: 11, kind: input, shape index: {}]
  %s12 = inlined_call_operand.hbm [shape: f32[8,128], index: 12, kind: output, shape index: {}]
  %s13 = sld [smem:[#allocation0]]
  $region78: #{tpu_custom_call.1} parent=0
    _
  %s15 = ssub.s32 1, %s13
  %s16 = scalar_select 0, %s15, %s13
  $region1: #{tpu_custom_call.1} parent=0
    #allocation2 [shape = 'u8[4096]{0}', space=vmem, size = 0x1000, scoped, tag = 'input window, operand 0, single buffered']
    #allocation3 [shape = 's32[1]{0}', space=sflag, size = 0x4, scoped, tag = 'scoped memory for tpu_custom_call.1']
    #allocation4 [shape = 's32[1]{0}', space=sflag, size = 0x4, scoped, tag = 'scoped memory for tpu_custom_call.1']
    #allocation5 [shape = 'u8[16384]{0}', space=vmem, size = 0x4000, scoped, tag = 'input window, operand 1, single buffered']
    #allocation6 [shape = 's32[1]{0}', space=sflag, size = 0x4, scoped, tag = 'scoped memory for tpu_custom_call.1']
    #allocation7 [shape = 'u8[16384]{0}', space=vmem, size = 0x4000, scoped, tag = 'input window, operand 4, single buffered']
    #allocation8 [shape = 'u8[16384]{0}', space=vmem, size = 0x4000, scoped, tag = 'input window, operand 7, single buffered']
    #allocation9 [shape = 's32[1]{0}', space=sflag, size = 0x4, scoped, tag = 'scoped memory for tpu_custom_call.1']
    #allocation10 [shape = 'u8[512]{0}', space=vmem, size = 0x400, scoped, tag = 'input window, operand 9, single buffered']
    #allocation11 [shape = 'u8[4096]{0}', space=vmem, size = 0x1000, scoped, tag = 'output window, operand 0, single buffered']
    %17 = vsyncpa [#allocation3], 0
    %18 = vsyncpa [#allocation6], 0
    %19 = vsyncpa [#allocation9], 0
    %20 = vsyncpa [#allocation4], 0
    // Predicated region
    $region2: #{tpu_custom_call.1} parent=1 // pred_check
      _
    $region3: #{tpu_custom_call.1} parent=1 // pred_check_branch
      %22 = sbr.rel (0) target = $region5
    $region4: #{tpu_custom_call.1} parent=1 // pred_region
      %s24 = ssub.s32 128, 128
      %25 = vsyncadd [#allocation3], %s24
      %s27 = sshll.u32 [#allocation2], 4
      %s28 = int_to_ptr.vmem [resolvable:$true] %s27
      %30 = dma.hbm_to_vmem [thread:$0]  %s0, 128, %s28, [#allocation3]
    $region5: #{tpu_custom_call.1} parent=1 // pred_fallthru
      _
    // Predicated region
    $region6: #{tpu_custom_call.1} parent=1 // pred_check
      _
    $region7: #{tpu_custom_call.1} parent=1 // pred_check_branch
      %32 = sbr.rel (0) target = $region9
    $region8: #{tpu_custom_call.1} parent=1 // pred_region
      %s34 = ssub.s32 512, 512
      %35 = vsyncadd [#allocation6], %s34
      %s36 = sshll.u32 [#allocation5], 4
      %s37 = int_to_ptr.vmem [resolvable:$true] %s36
      %42 = dma.hbm_to_vmem [thread:$0]  %s1, 512, %s37, [#allocation6], 128, 128, 8
    $region9: #{tpu_custom_call.1} parent=1 // pred_fallthru
      _
    // Predicated region
    $region10: #{tpu_custom_call.1} parent=1 // pred_check
      _
    $region11: #{tpu_custom_call.1} parent=1 // pred_check_branch
      %44 = sbr.rel (0) target = $region13
    $region12: #{tpu_custom_call.1} parent=1 // pred_region
      _
    $region13: #{tpu_custom_call.1} parent=1 // pred_fallthru
      _
    // Predicated region
    $region14: #{tpu_custom_call.1} parent=1 // pred_check
      _
    $region15: #{tpu_custom_call.1} parent=1 // pred_check_branch
      %46 = sbr.rel (0) target = $region17
    $region16: #{tpu_custom_call.1} parent=1 // pred_region
      _
    $region17: #{tpu_custom_call.1} parent=1 // pred_fallthru
      _
    // Predicated region
    $region18: #{tpu_custom_call.1} parent=1 // pred_check
      _
    $region19: #{tpu_custom_call.1} parent=1 // pred_check_branch
      %48 = sbr.rel (0) target = $region21
    $region20: #{tpu_custom_call.1} parent=1 // pred_region
      %s50 = ssub.s32 512, 512
      %51 = vsyncadd [#allocation6], %s50
      %s52 = sshll.u32 [#allocation7], 4
      %s53 = int_to_ptr.vmem [resolvable:$true] %s52
      %58 = dma.hbm_to_vmem [thread:$0]  %s4, 512, %s53, [#allocation6], 128, 128, 8
    $region21: #{tpu_custom_call.1} parent=1 // pred_fallthru
      _
    // Predicated region
    $region22: #{tpu_custom_call.1} parent=1 // pred_check
      _
    $region23: #{tpu_custom_call.1} parent=1 // pred_check_branch
      %60 = sbr.rel (0) target = $region25
    $region24: #{tpu_custom_call.1} parent=1 // pred_region
      _
    $region25: #{tpu_custom_call.1} parent=1 // pred_fallthru
      _
    // Predicated region
    $region26: #{tpu_custom_call.1} parent=1 // pred_check
      _
    $region27: #{tpu_custom_call.1} parent=1 // pred_check_branch
      %62 = sbr.rel (0) target = $region29
    $region28: #{tpu_custom_call.1} parent=1 // pred_region
      _
    $region29: #{tpu_custom_call.1} parent=1 // pred_fallthru
      _
    // Predicated region
    $region30: #{tpu_custom_call.1} parent=1 // pred_check
      _
    $region31: #{tpu_custom_call.1} parent=1 // pred_check_branch
      %64 = sbr.rel (0) target = $region33
    $region32: #{tpu_custom_call.1} parent=1 // pred_region
      %s66 = ssub.s32 512, 512
      %67 = vsyncadd [#allocation9], %s66
      %s68 = sshll.u32 [#allocation8], 4
      %s69 = int_to_ptr.vmem [resolvable:$true] %s68
      %74 = dma.hbm_to_vmem [thread:$0]  %s7, 512, %s69, [#allocation9], 128, 128, 8
    $region33: #{tpu_custom_call.1} parent=1 // pred_fallthru
      _
    // Predicated region
    $region34: #{tpu_custom_call.1} parent=1 // pred_check
      _
    $region35: #{tpu_custom_call.1} parent=1 // pred_check_branch
      %76 = sbr.rel (0) target = $region37
    $region36: #{tpu_custom_call.1} parent=1 // pred_region
      _
    $region37: #{tpu_custom_call.1} parent=1 // pred_fallthru
      _
    // Predicated region
    $region38: #{tpu_custom_call.1} parent=1 // pred_check
      _
    $region39: #{tpu_custom_call.1} parent=1 // pred_check_branch
      %78 = sbr.rel (0) target = $region41
    $region40: #{tpu_custom_call.1} parent=1 // pred_region
      %s80 = ssub.s32 16, 16
      %81 = vsyncadd [#allocation9], %s80
      %s83 = sshll.u32 [#allocation10], 4
      %s84 = int_to_ptr.vmem [resolvable:$true] %s83
      %86 = dma.hbm_to_vmem [thread:$0]  %s9, 16, %s84, [#allocation9]
    $region41: #{tpu_custom_call.1} parent=1 // pred_fallthru
      _
    // Predicated region
    $region42: #{tpu_custom_call.1} parent=1 // pred_check
      _
    $region43: #{tpu_custom_call.1} parent=1 // pred_check_branch
      %88 = sbr.rel (0) target = $region45
    $region44: #{tpu_custom_call.1} parent=1 // pred_region
      _
    $region45: #{tpu_custom_call.1} parent=1 // pred_fallthru
      _
    // Predicated region
    $region46: #{tpu_custom_call.1} parent=1 // pred_check
      _
    $region47: #{tpu_custom_call.1} parent=1 // pred_check_branch
      %90 = sbr.rel (0) target = $region49
    $region48: #{tpu_custom_call.1} parent=1 // pred_region
      _
    $region49: #{tpu_custom_call.1} parent=1 // pred_fallthru
      _
    // Predicated region
    $region50: #{tpu_custom_call.1} parent=1 // pred_check
      _
    $region51: #{tpu_custom_call.1} parent=1 // pred_check_branch
      %92 = sbr.rel (0) target = $region53
    $region52: #{tpu_custom_call.1} parent=1 // pred_region
      %93 = dma.done [#allocation3], 128
    $region53: #{tpu_custom_call.1} parent=1 // pred_fallthru
      _
    // Predicated region
    $region54: #{tpu_custom_call.1} parent=1 // pred_check
      _
    $region55: #{tpu_custom_call.1} parent=1 // pred_check_branch
      %95 = sbr.rel (0) target = $region57
    $region56: #{tpu_custom_call.1} parent=1 // pred_region
      %96 = dma.done [#allocation6], 512
    $region57: #{tpu_custom_call.1} parent=1 // pred_fallthru
      _
    // Predicated region
    $region58: #{tpu_custom_call.1} parent=1 // pred_check
      _
    $region59: #{tpu_custom_call.1} parent=1 // pred_check_branch
      %98 = sbr.rel (0) target = $region61
    $region60: #{tpu_custom_call.1} parent=1 // pred_region
      %99 = dma.done [#allocation6], 512
    $region61: #{tpu_custom_call.1} parent=1 // pred_fallthru
      _
    // Predicated region
    $region62: #{tpu_custom_call.1} parent=1 // pred_check
      _
    $region63: #{tpu_custom_call.1} parent=1 // pred_check_branch
      %101 = sbr.rel (0) target = $region65
    $region64: #{tpu_custom_call.1} parent=1 // pred_region
      %102 = dma.done [#allocation9], 512
    $region65: #{tpu_custom_call.1} parent=1 // pred_fallthru
      _
    // Predicated region
    $region66: #{tpu_custom_call.1} parent=1 // pred_check
      _
    $region67: #{tpu_custom_call.1} parent=1 // pred_check_branch
      %104 = sbr.rel (0) target = $region69
    $region68: #{tpu_custom_call.1} parent=1 // pred_region
      %105 = dma.done [#allocation9], 16
    $region69: #{tpu_custom_call.1} parent=1 // pred_fallthru
      _
    %v106 = vld [vmem:[#allocation2] sm:$0xff]
    %v107 = vld [vmem:[#allocation5] sm:$0xff]
    %v108 = vld [vmem:[#allocation5 + $0x8] sm:$0xff]
    %v109 = vld [vmem:[#allocation5 + $0x10] sm:$0xff]
    %v110 = vld [vmem:[#allocation5 + $0x18] sm:$0xff]
    %v111 = vld [vmem:[%s2] sm:$0x1]
    %v113 = vlaneseq
    %v114 = vshrl.u32 %v113, 7
    %v115 = vsub.s32 0, %v114
    %v116 = vrot.slane %v111, %v115
    %vm118 = vcmask 261120
    %v120 = vsel %vm118, %v106, 0
    %122 = vmatprep.subr.mxu0 0.0
    %123 = vmatpush1.msra.mxu0 %v107
    %124 = vmatprep.subr.mxu0 0.0
    %125 = vmatpush1.msra.mxu0 %v108
    %126 = vmatprep.subr.mxu0 0.0
    %127 = vmatpush1.msra.mxu0 %v109
    %128 = vmatprep.subr.mxu0 0.0
    %129 = vmatpush1.msra.mxu0 %v110
    %130 = vmatprep.subr.mxu0 0.0
    %131 = vmatpush1.msra.mxu0 0.0
    %132 = vmatprep.subr.mxu0 0.0
    %133 = vmatpush1.msra.mxu0 0.0
    %134 = vmatprep.subr.mxu0 0.0
    %135 = vmatpush1.msra.mxu0 0.0
    %136 = vmatprep.subr.mxu0 0.0
    %137 = vmatpush1.msra.mxu0 0.0
    %138 = vmatprep.subr.mxu0 0.0
    %139 = vmatpush1.msra.mxu0 0.0
    %140 = vmatprep.subr.mxu0 0.0
    %141 = vmatpush1.msra.mxu0 0.0
    %142 = vmatprep.subr.mxu0 0.0
    %143 = vmatpush1.msra.mxu0 0.0
    %144 = vmatprep.subr.mxu0 0.0
    %145 = vmatpush1.msra.mxu0 0.0
    %146 = vmatprep.subr.mxu0 0.0
    %147 = vmatpush1.msra.mxu0 0.0
    %148 = vmatprep.subr.mxu0 0.0
    %149 = vmatpush1.msra.mxu0 0.0
    %150 = vmatprep.subr.mxu0 0.0
    %151 = vmatpush1.msra.mxu0 0.0
    %152 = vmatprep.subr.mxu0 0.0
    %153 = vmatpush1.msra.mxu0 0.0
    %154 = vmatprep.subr.mxu0 0.0
    %155 = vmatpush1.msra.mxu0 0.0
    %156 = vmatprep.subr.mxu0 0.0
    %157 = vmatpush1.msra.mxu0 0.0
    %158 = vmatprep.subr.mxu0 0.0
    %159 = vmatpush1.msra.mxu0 0.0
    %160 = vmatprep.subr.mxu0 0.0
    %161 = vmatpush1.msra.mxu0 0.0
    %162 = vmatprep.subr.mxu0 0.0
    %163 = vmatpush1.msra.mxu0 0.0
    %164 = vmatprep.subr.mxu0 0.0
    %165 = vmatpush1.msra.mxu0 0.0
    %166 = vmatprep.subr.mxu0 0.0
    %167 = vmatpush1.msra.mxu0 0.0
    %168 = vmatprep.subr.mxu0 0.0
    %169 = vmatpush1.msra.mxu0 0.0
    %170 = vmatprep.subr.mxu0 0.0
    %171 = vmatpush1.msra.mxu0 0.0
    %172 = vmatprep.subr.mxu0 0.0
    %173 = vmatpush1.msra.mxu0 0.0
    %174 = vmatprep.subr.mxu0 0.0
    %175 = vmatpush1.msra.mxu0 0.0
    %176 = vmatprep.subr.mxu0 0.0
    %177 = vmatpush1.msra.mxu0 0.0
    %178 = vmatprep.subr.mxu0 0.0
    %179 = vmatpush1.msra.mxu0 0.0
    %180 = vmatprep.subr.mxu0 0.0
    %181 = vmatpush1.msra.mxu0 0.0
    %182 = vmatprep.subr.mxu0 0.0
    %183 = vmatpush1.msra.mxu0 0.0
    %184 = vmatprep.subr.mxu0 0.0
    %185 = vmatpush1.msra.mxu0 0.0
    %186 = vmatprep.mubr.f32.mxu0 0.0
    %187 = vmatmul.mubr.f32.gmra.mrb[0].mxu0 %v120
    %v188 = vpop.f32.mrb[0].mxu0
    %v189 = vadd.f32 %v116, %v188
    %v190 = vpop.f32.mrb[0].mxu0
    %191 = vdwg.mxu0
    %vm192 = vcmp.ge.f32.partialorder %v189, 0.0
    %v193 = vmul.f32 %v189, 0.01
    %v194 = vsel %vm192, %v189, %v193
    %v195 = vld [vmem:[%s3] sm:$0x1]
    %v197 = vlaneseq
    %v198 = vshrl.u32 %v197, 7
    %v199 = vsub.s32 0, %v198
    %v200 = vrot.slane %v195, %v199
    %v202 = vadd.f32 %v194, %v200
    %v203 = vld [vmem:[#allocation7] sm:$0xff]
    %v204 = vld [vmem:[#allocation7 + $0x8] sm:$0xff]
    %v205 = vld [vmem:[#allocation7 + $0x10] sm:$0xff]
    %v206 = vld [vmem:[#allocation7 + $0x18] sm:$0xff]
    %v207 = vld [vmem:[%s5] sm:$0x1]
    %v209 = vlaneseq
    %v210 = vshrl.u32 %v209, 7
    %v211 = vsub.s32 0, %v210
    %v212 = vrot.slane %v207, %v211
    %v215 = vsel %vm118, %v202, 0
    %217 = vmatprep.subr.mxu0 0.0
    %218 = vmatpush1.msra.mxu0 %v203
    %219 = vmatprep.subr.mxu0 0.0
    %220 = vmatpush1.msra.mxu0 %v204
    %221 = vmatprep.subr.mxu0 0.0
    %222 = vmatpush1.msra.mxu0 %v205
    %223 = vmatprep.subr.mxu0 0.0
    %224 = vmatpush1.msra.mxu0 %v206
    %225 = vmatprep.subr.mxu0 0.0
    %226 = vmatpush1.msra.mxu0 0.0
    %227 = vmatprep.subr.mxu0 0.0
    %228 = vmatpush1.msra.mxu0 0.0
    %229 = vmatprep.subr.mxu0 0.0
    %230 = vmatpush1.msra.mxu0 0.0
    %231 = vmatprep.subr.mxu0 0.0
    %232 = vmatpush1.msra.mxu0 0.0
    %233 = vmatprep.subr.mxu0 0.0
    %234 = vmatpush1.msra.mxu0 0.0
    %235 = vmatprep.subr.mxu0 0.0
    %236 = vmatpush1.msra.mxu0 0.0
    %237 = vmatprep.subr.mxu0 0.0
    %238 = vmatpush1.msra.mxu0 0.0
    %239 = vmatprep.subr.mxu0 0.0
    %240 = vmatpush1.msra.mxu0 0.0
    %241 = vmatprep.subr.mxu0 0.0
    %242 = vmatpush1.msra.mxu0 0.0
    %243 = vmatprep.subr.mxu0 0.0
    %244 = vmatpush1.msra.mxu0 0.0
    %245 = vmatprep.subr.mxu0 0.0
    %246 = vmatpush1.msra.mxu0 0.0
    %247 = vmatprep.subr.mxu0 0.0
    %248 = vmatpush1.msra.mxu0 0.0
    %249 = vmatprep.subr.mxu0 0.0
    %250 = vmatpush1.msra.mxu0 0.0
    %251 = vmatprep.subr.mxu0 0.0
    %252 = vmatpush1.msra.mxu0 0.0
    %253 = vmatprep.subr.mxu0 0.0
    %254 = vmatpush1.msra.mxu0 0.0
    %255 = vmatprep.subr.mxu0 0.0
    %256 = vmatpush1.msra.mxu0 0.0
    %257 = vmatprep.subr.mxu0 0.0
    %258 = vmatpush1.msra.mxu0 0.0
    %259 = vmatprep.subr.mxu0 0.0
    %260 = vmatpush1.msra.mxu0 0.0
    %261 = vmatprep.subr.mxu0 0.0
    %262 = vmatpush1.msra.mxu0 0.0
    %263 = vmatprep.subr.mxu0 0.0
    %264 = vmatpush1.msra.mxu0 0.0
    %265 = vmatprep.subr.mxu0 0.0
    %266 = vmatpush1.msra.mxu0 0.0
    %267 = vmatprep.subr.mxu0 0.0
    %268 = vmatpush1.msra.mxu0 0.0
    %269 = vmatprep.subr.mxu0 0.0
    %270 = vmatpush1.msra.mxu0 0.0
    %271 = vmatprep.subr.mxu0 0.0
    %272 = vmatpush1.msra.mxu0 0.0
    %273 = vmatprep.subr.mxu0 0.0
    %274 = vmatpush1.msra.mxu0 0.0
    %275 = vmatprep.subr.mxu0 0.0
    %276 = vmatpush1.msra.mxu0 0.0
    %277 = vmatprep.subr.mxu0 0.0
    %278 = vmatpush1.msra.mxu0 0.0
    %279 = vmatprep.subr.mxu0 0.0
    %280 = vmatpush1.msra.mxu0 0.0
    %281 = vmatprep.mubr.f32.mxu0 0.0
    %282 = vmatmul.mubr.f32.gmra.mrb[0].mxu0 %v215
    %v283 = vpop.f32.mrb[0].mxu0
    %v284 = vadd.f32 %v212, %v283
    %v285 = vpop.f32.mrb[0].mxu0
    %286 = vdwg.mxu0
    %vm287 = vcmp.ge.f32.partialorder %v284, 0.0
    %v288 = vmul.f32 %v284, 0.01
    %v289 = vsel %vm287, %v284, %v288
    %v290 = vld [vmem:[%s6] sm:$0x1]
    %v292 = vlaneseq
    %v293 = vshrl.u32 %v292, 7
    %v294 = vsub.s32 0, %v293
    %v295 = vrot.slane %v290, %v294
    %v297 = vadd.f32 %v289, %v295
    %v298 = vld [vmem:[#allocation8] sm:$0xff]
    %v299 = vld [vmem:[#allocation8 + $0x8] sm:$0xff]
    %v300 = vld [vmem:[#allocation8 + $0x10] sm:$0xff]
    %v301 = vld [vmem:[#allocation8 + $0x18] sm:$0xff]
    %v302 = vld [vmem:[%s8] sm:$0x1]
    %v304 = vlaneseq
    %v305 = vshrl.u32 %v304, 7
    %v306 = vsub.s32 0, %v305
    %v307 = vrot.slane %v302, %v306
    %v310 = vsel %vm118, %v297, 0
    %312 = vmatprep.subr.mxu0 0.0
    %313 = vmatpush1.msra.mxu0 %v298
    %314 = vmatprep.subr.mxu0 0.0
    %315 = vmatpush1.msra.mxu0 %v299
    %316 = vmatprep.subr.mxu0 0.0
    %317 = vmatpush1.msra.mxu0 %v300
    %318 = vmatprep.subr.mxu0 0.0
    %319 = vmatpush1.msra.mxu0 %v301
    %320 = vmatprep.subr.mxu0 0.0
    %321 = vmatpush1.msra.mxu0 0.0
    %322 = vmatprep.subr.mxu0 0.0
    %323 = vmatpush1.msra.mxu0 0.0
    %324 = vmatprep.subr.mxu0 0.0
    %325 = vmatpush1.msra.mxu0 0.0
    %326 = vmatprep.subr.mxu0 0.0
    %327 = vmatpush1.msra.mxu0 0.0
    %328 = vmatprep.subr.mxu0 0.0
    %329 = vmatpush1.msra.mxu0 0.0
    %330 = vmatprep.subr.mxu0 0.0
    %331 = vmatpush1.msra.mxu0 0.0
    %332 = vmatprep.subr.mxu0 0.0
    %333 = vmatpush1.msra.mxu0 0.0
    %334 = vmatprep.subr.mxu0 0.0
    %335 = vmatpush1.msra.mxu0 0.0
    %336 = vmatprep.subr.mxu0 0.0
    %337 = vmatpush1.msra.mxu0 0.0
    %338 = vmatprep.subr.mxu0 0.0
    %339 = vmatpush1.msra.mxu0 0.0
    %340 = vmatprep.subr.mxu0 0.0
    %341 = vmatpush1.msra.mxu0 0.0
    %342 = vmatprep.subr.mxu0 0.0
    %343 = vmatpush1.msra.mxu0 0.0
    %344 = vmatprep.subr.mxu0 0.0
    %345 = vmatpush1.msra.mxu0 0.0
    %346 = vmatprep.subr.mxu0 0.0
    %347 = vmatpush1.msra.mxu0 0.0
    %348 = vmatprep.subr.mxu0 0.0
    %349 = vmatpush1.msra.mxu0 0.0
    %350 = vmatprep.subr.mxu0 0.0
    %351 = vmatpush1.msra.mxu0 0.0
    %352 = vmatprep.subr.mxu0 0.0
    %353 = vmatpush1.msra.mxu0 0.0
    %354 = vmatprep.subr.mxu0 0.0
    %355 = vmatpush1.msra.mxu0 0.0
    %356 = vmatprep.subr.mxu0 0.0
    %357 = vmatpush1.msra.mxu0 0.0
    %358 = vmatprep.subr.mxu0 0.0
    %359 = vmatpush1.msra.mxu0 0.0
    %360 = vmatprep.subr.mxu0 0.0
    %361 = vmatpush1.msra.mxu0 0.0
    %362 = vmatprep.subr.mxu0 0.0
    %363 = vmatpush1.msra.mxu0 0.0
    %364 = vmatprep.subr.mxu0 0.0
    %365 = vmatpush1.msra.mxu0 0.0
    %366 = vmatprep.subr.mxu0 0.0
    %367 = vmatpush1.msra.mxu0 0.0
    %368 = vmatprep.subr.mxu0 0.0
    %369 = vmatpush1.msra.mxu0 0.0
    %370 = vmatprep.subr.mxu0 0.0
    %371 = vmatpush1.msra.mxu0 0.0
    %372 = vmatprep.subr.mxu0 0.0
    %373 = vmatpush1.msra.mxu0 0.0
    %374 = vmatprep.subr.mxu0 0.0
    %375 = vmatpush1.msra.mxu0 0.0
    %376 = vmatprep.mubr.f32.mxu0 0.0
    %377 = vmatmul.mubr.f32.gmra.mrb[0].mxu0 %v310
    %v378 = vpop.f32.mrb[0].mxu0
    %v379 = vadd.f32 %v307, %v378
    %v380 = vpop.f32.mrb[0].mxu0
    %381 = vdwg.mxu0
    %vm382 = vcmp.ge.f32.partialorder %v379, 0.0
    %v383 = vmul.f32 %v379, 0.01
    %v384 = vsel %vm382, %v379, %v383
    %v385 = vld [vmem:[#allocation10] sm:$0x1]
    %v387 = vlaneseq
    %v388 = vshrl.u32 %v387, 7
    %v389 = vsub.s32 0, %v388
    %v390 = vrot.slane %v385, %v389
    %v392 = vadd.f32 %v384, %v390
    %v393 = vld [vmem:[%s10] sm:$0xff]
    %v394 = vld [vmem:[%s10 + $0x8] sm:$0xff]
    %v395 = vld [vmem:[%s10 + $0x10] sm:$0xff]
    %v396 = vld [vmem:[%s10 + $0x18] sm:$0xff]
    %v397 = vld [vmem:[%s11] sm:$0x1]
    %v399 = vlaneseq
    %v400 = vshrl.u32 %v399, 7
    %v401 = vsub.s32 0, %v400
    %v402 = vrot.slane %v397, %v401
    %v405 = vsel %vm118, %v392, 0
    %407 = vmatprep.subr.mxu0 0.0
    %408 = vmatpush1.msra.mxu0 %v393
    %409 = vmatprep.subr.mxu0 0.0
    %410 = vmatpush1.msra.mxu0 %v394
    %411 = vmatprep.subr.mxu0 0.0
    %412 = vmatpush1.msra.mxu0 %v395
    %413 = vmatprep.subr.mxu0 0.0
    %414 = vmatpush1.msra.mxu0 %v396
    %415 = vmatprep.subr.mxu0 0.0
    %416 = vmatpush1.msra.mxu0 0.0
    %417 = vmatprep.subr.mxu0 0.0
    %418 = vmatpush1.msra.mxu0 0.0
    %419 = vmatprep.subr.mxu0 0.0
    %420 = vmatpush1.msra.mxu0 0.0
    %421 = vmatprep.subr.mxu0 0.0
    %422 = vmatpush1.msra.mxu0 0.0
    %423 = vmatprep.subr.mxu0 0.0
    %424 = vmatpush1.msra.mxu0 0.0
    %425 = vmatprep.subr.mxu0 0.0
    %426 = vmatpush1.msra.mxu0 0.0
    %427 = vmatprep.subr.mxu0 0.0
    %428 = vmatpush1.msra.mxu0 0.0
    %429 = vmatprep.subr.mxu0 0.0
    %430 = vmatpush1.msra.mxu0 0.0
    %431 = vmatprep.subr.mxu0 0.0
    %432 = vmatpush1.msra.mxu0 0.0
    %433 = vmatprep.subr.mxu0 0.0
    %434 = vmatpush1.msra.mxu0 0.0
    %435 = vmatprep.subr.mxu0 0.0
    %436 = vmatpush1.msra.mxu0 0.0
    %437 = vmatprep.subr.mxu0 0.0
    %438 = vmatpush1.msra.mxu0 0.0
    %439 = vmatprep.subr.mxu0 0.0
    %440 = vmatpush1.msra.mxu0 0.0
    %441 = vmatprep.subr.mxu0 0.0
    %442 = vmatpush1.msra.mxu0 0.0
    %443 = vmatprep.subr.mxu0 0.0
    %444 = vmatpush1.msra.mxu0 0.0
    %445 = vmatprep.subr.mxu0 0.0
    %446 = vmatpush1.msra.mxu0 0.0
    %447 = vmatprep.subr.mxu0 0.0
    %448 = vmatpush1.msra.mxu0 0.0
    %449 = vmatprep.subr.mxu0 0.0
    %450 = vmatpush1.msra.mxu0 0.0
    %451 = vmatprep.subr.mxu0 0.0
    %452 = vmatpush1.msra.mxu0 0.0
    %453 = vmatprep.subr.mxu0 0.0
    %454 = vmatpush1.msra.mxu0 0.0
    %455 = vmatprep.subr.mxu0 0.0
    %456 = vmatpush1.msra.mxu0 0.0
    %457 = vmatprep.subr.mxu0 0.0
    %458 = vmatpush1.msra.mxu0 0.0
    %459 = vmatprep.subr.mxu0 0.0
    %460 = vmatpush1.msra.mxu0 0.0
    %461 = vmatprep.subr.mxu0 0.0
    %462 = vmatpush1.msra.mxu0 0.0
    %463 = vmatprep.subr.mxu0 0.0
    %464 = vmatpush1.msra.mxu0 0.0
    %465 = vmatprep.subr.mxu0 0.0
    %466 = vmatpush1.msra.mxu0 0.0
    %467 = vmatprep.subr.mxu0 0.0
    %468 = vmatpush1.msra.mxu0 0.0
    %469 = vmatprep.subr.mxu0 0.0
    %470 = vmatpush1.msra.mxu0 0.0
    %471 = vmatprep.mubr.f32.mxu0 0.0
    %472 = vmatmul.mubr.f32.gmra.mrb[0].mxu0 %v405
    %v473 = vpop.f32.mrb[0].mxu0
    %v474 = vadd.f32 %v402, %v473
    %v475 = vpop.f32.mrb[0].mxu0
    %476 = vdwg.mxu0
    %477 = vst [vmem:[#allocation11] sm:$0xff] %v474
    // Predicated region
    $region70: #{tpu_custom_call.1} parent=1 // pred_check
      _
    $region71: #{tpu_custom_call.1} parent=1 // pred_check_branch
      %479 = sbr.rel (0) target = $region73
    $region72: #{tpu_custom_call.1} parent=1 // pred_region
      %s481 = ssub.s32 128, 128
      %482 = vsyncadd [#allocation4], %s481
      %s484 = sshll.u32 [#allocation11], 4
      %s485 = int_to_ptr.vmem [resolvable:$true] %s484
      %487 = dma.vmem_to_hbm [thread:$0]  %s485, 128, %s12, [#allocation4]
    $region73: #{tpu_custom_call.1} parent=1 // pred_fallthru
      _
    // Predicated region
    $region74: #{tpu_custom_call.1} parent=1 // pred_check
      _
    $region75: #{tpu_custom_call.1} parent=1 // pred_check_branch
      %489 = sbr.rel (0) target = $region77
    $region76: #{tpu_custom_call.1} parent=1 // pred_region
      %490 = dma.done [#allocation4], 128
    $region77: #{tpu_custom_call.1} parent=1 // pred_fallthru
      _
    %491 = vsyncpa [#allocation3], 1
    %492 = vsyncpa [#allocation6], 1
    %493 = vsyncpa [#allocation9], 1
    %494 = vsyncpa [#allocation4], 1

</llo_original>
